<compile_context>
chip_gen: v5e
topology: v5e:2x2
jax: 0.10.0
libtpu: 0.0.40
codegen_flags: <defaults>
</compile_context>

<pallas_src>
import jax
import jax.numpy as jnp
from jax.experimental import pallas as pl
from jax.experimental.pallas import tpu as pltpu


def _attn_fusion_kernel(xs_ref, w1_ref, b1_ref, w2_ref, b2_ref, o_ref):
    xs = xs_ref[...]                       # (2, BT, N, C) f32 — stacked [x1; x2]
    _, bt, n, c = xs.shape

    w1 = w1_ref[...]                       # (C, H)
    b1 = b1_ref[...]                       # (1, H)
    w2 = w2_ref[...]                       # (H, C)
    b2 = b2_ref[...]                       # (1, C)

    # Shared MLP run once on all rows of x1 and x2 (2*BT*N rows stacked).
    xf = xs.reshape(2 * bt * n, c)
    h = jnp.maximum(
        jnp.dot(xf, w1,
                preferred_element_type=jnp.float32,
                precision=jax.lax.Precision.HIGHEST) + b1,
        0.0)
    a = jnp.dot(h, w2,
                preferred_element_type=jnp.float32,
                precision=jax.lax.Precision.HIGHEST) + b2   # (2*BT*N, C)
    a = a.reshape(2, bt, n, c)

    # Stable softmax over the row dimension (PyTorch dim=0), per (half, batch).
    m = jnp.max(a, axis=2, keepdims=True)
    e = jnp.exp(a - m)
    s = jnp.sum(e, axis=2, keepdims=True)
    attn = e * (1.0 / s)                   # reciprocal only on the (…,1,C) denom

    fused = attn[0] * xs[0] + attn[1] * xs[1]                # (BT, N, C)
    # Lane-dense store: (BT, N*C) block, N*C is a multiple of 128 at these sizes.
    o_ref[...] = fused.reshape(bt, n * c).astype(o_ref.dtype)


def _pick_batch_tile(b, n, c):
    """Largest per-step batch tile.

    One fat grid step (BT = B) unless the double-buffered per-step footprint
    (stacked f32 input 2*n*c + f32 output n*c, x2 buffers) exceeds ~8 MiB; only
    then split, keeping BT a multiple of 8 so the (BT, N*C) output block stays
    layout-legal."""
    per_batch_bytes = 2 * (2 * n * c + n * c) * 4
    budget = 8 << 20
    if b * per_batch_bytes <= budget:
        return b
    for cand in range(b - 1, 0, -1):
        if b % cand == 0 and cand % 8 == 0 and cand * per_batch_bytes <= budget:
            return cand
    return b   # fallback: single fat step; default scoped VMEM still has headroom


def attention_fusion(x1, x2, w1, b1, w2, b2):
    """x1, x2: (N, C) or (B, N, C) float32.
    w1: (C, C//2), b1: (1, C//2), w2: (C//2, C), b2: (1, C)  (pre-transposed)."""
    squeeze = x1.ndim == 2
    if squeeze:
        x1 = x1[None]
        x2 = x2[None]
    b, n, c = x1.shape
    hdim = w1.shape[1]

    bt = _pick_batch_tile(b, n, c)
    grid = (b // bt,)

    # Pre-stack so the kernel sees one input stream (no in-kernel concatenate).
    xs = jnp.stack([x1, x2], axis=0)       # (2, B, N, C)

    rows = 2 * b * n
    cost = pl.CostEstimate(
        flops=rows * (2 * c * hdim + 2 * hdim * c) + 10 * b * n * c,
        transcendentals=rows * c,                                   # exp
        bytes_accessed=(3 * b * n * c + c * hdim + hdim * c + hdim + c) * 4,
    )

    out_flat = pl.pallas_call(
        _attn_fusion_kernel,
        out_shape=jax.ShapeDtypeStruct((b, n * c), x1.dtype),
        grid=grid,
        in_specs=[
            pl.BlockSpec((2, bt, n, c), lambda i: (0, i, 0, 0)),    # stacked x1/x2
            pl.BlockSpec((c, hdim), lambda i: (0, 0)),              # w1 (resident)
            pl.BlockSpec((1, hdim), lambda i: (0, 0)),              # b1 (resident)
            pl.BlockSpec((hdim, c), lambda i: (0, 0)),              # w2 (resident)
            pl.BlockSpec((1, c), lambda i: (0, 0)),                 # b2 (resident)
        ],
        out_specs=pl.BlockSpec((bt, n * c), lambda i: (i, 0)),      # lane-dense output
        compiler_params=pltpu.CompilerParams(
            dimension_semantics=("parallel",),   # only matters if the VMEM split kicks in
        ),
        cost_estimate=cost,
    )(xs, w1, b1, w2, b2)

    out = out_flat.reshape(b, n, c)
    return out[0] if squeeze else out


def _reference(x1, x2, w1, b1, w2, b2):
    def mlp(x):
        return jnp.maximum(x @ w1 + b1, 0.0) @ w2 + b2
    a1 = jax.nn.softmax(mlp(x1), axis=-2)     # softmax over rows (dim=0 per sample)
    a2 = jax.nn.softmax(mlp(x2), axis=-2)
    return a1 * x1 + a2 * x2


if __name__ == "__main__":
    B, N, C = 4, 8, 32        # batch of 4 independent (seq=8, in_channels=32) pairs
    H = C // 2

    key = jax.random.PRNGKey(0)
    k_x1, k_x2, k_w1, k_b1, k_w2, k_b2 = jax.random.split(key, 6)

    x1 = jax.random.normal(k_x1, (B, N, C), dtype=jnp.float32)
    x2 = jax.random.normal(k_x2, (B, N, C), dtype=jnp.float32)

    # Deterministic parameter init (mimicking nn.Linear's uniform init ranges).
    lim1 = 1.0 / (C ** 0.5)
    lim2 = 1.0 / (H ** 0.5)
    w1 = jax.random.uniform(k_w1, (C, H), jnp.float32, -lim1, lim1)   # Linear(C, C//2), transposed
    b1 = jax.random.uniform(k_b1, (1, H), jnp.float32, -lim1, lim1)
    w2 = jax.random.uniform(k_w2, (H, C), jnp.float32, -lim2, lim2)   # Linear(C//2, C), transposed
    b2 = jax.random.uniform(k_b2, (1, C), jnp.float32, -lim2, lim2)

    # Batched path (one pallas_call, single fat grid step).
    out = attention_fusion(x1, x2, w1, b1, w2, b2)
    jax.block_until_ready(out)
    ref = _reference(x1, x2, w1, b1, w2, b2)
    assert out.shape == (B, N, C)
    assert jnp.allclose(out, ref, atol=1e-5, rtol=1e-5), "batched mismatch vs reference"

    # Unbatched path (original module signature: (N, C) inputs).
    out1 = attention_fusion(x1[0], x2[0], w1, b1, w2, b2)
    jax.block_until_ready(out1)
    assert out1.shape == (N, C)
    assert jnp.allclose(out1, ref[0], atol=1e-5, rtol=1e-5), "unbatched mismatch vs reference"

    print("KERNEL_OK")
</pallas_src>

<mosaic_0001>
module attributes {stable_mosaic.version = 11 : i64} {
  func.func @_attn_fusion_kernel(%arg0: i32, %arg1: memref<2x4x8x32xf32, #tpu.memory_space<vmem>>, %arg2: memref<32x16xf32, #tpu.memory_space<vmem>>, %arg3: memref<1x16xf32, #tpu.memory_space<vmem>>, %arg4: memref<16x32xf32, #tpu.memory_space<vmem>>, %arg5: memref<1x32xf32, #tpu.memory_space<vmem>>, %arg6: memref<4x256xf32, #tpu.memory_space<vmem>>) attributes {dimension_semantics = [#tpu.dimension_semantics<parallel>], iteration_bounds = array<i64: 1>, scalar_prefetch = 0 : i64, scratch_operands = 0 : i64, tpu.core_type = #tpu.core_type<tc>, window_params = [{transform_indices = @transform_0, window_bounds = array<i64: 2, 4, 8, 32>}, {pipeline_mode = #tpu.pipeline_mode<synchronous>, transform_indices = @transform_1, window_bounds = array<i64: 32, 16>}, {pipeline_mode = #tpu.pipeline_mode<synchronous>, transform_indices = @transform_2, window_bounds = array<i64: 1, 16>}, {pipeline_mode = #tpu.pipeline_mode<synchronous>, transform_indices = @transform_3, window_bounds = array<i64: 16, 32>}, {pipeline_mode = #tpu.pipeline_mode<synchronous>, transform_indices = @transform_4, window_bounds = array<i64: 1, 32>}, {transform_indices = @transform_5, window_bounds = array<i64: 4, 256>}]} {
    %c0 = arith.constant 0 : index
    %c0_0 = arith.constant 0 : index
    %c0_1 = arith.constant 0 : index
    %c0_2 = arith.constant 0 : index
    %0 = vector.load %arg1[%c0, %c0_0, %c0_1, %c0_2] : memref<2x4x8x32xf32, #tpu.memory_space<vmem>>, vector<2x4x8x32xf32>
    %c0_3 = arith.constant 0 : index
    %c0_4 = arith.constant 0 : index
    %1 = vector.load %arg2[%c0_3, %c0_4] : memref<32x16xf32, #tpu.memory_space<vmem>>, vector<32x16xf32>
    %c0_5 = arith.constant 0 : index
    %c0_6 = arith.constant 0 : index
    %2 = vector.load %arg3[%c0_5, %c0_6] : memref<1x16xf32, #tpu.memory_space<vmem>>, vector<1x16xf32>
    %c0_7 = arith.constant 0 : index
    %c0_8 = arith.constant 0 : index
    %3 = vector.load %arg4[%c0_7, %c0_8] : memref<16x32xf32, #tpu.memory_space<vmem>>, vector<16x32xf32>
    %c0_9 = arith.constant 0 : index
    %c0_10 = arith.constant 0 : index
    %4 = vector.load %arg5[%c0_9, %c0_10] : memref<1x32xf32, #tpu.memory_space<vmem>>, vector<1x32xf32>
    %5 = vector.shape_cast %0 : vector<2x4x8x32xf32> to vector<64x32xf32>
    %cst = arith.constant dense<0.000000e+00> : vector<64x16xf32>
    %6 = tpu.matmul %5, %1, %cst {dimension_numbers = #tpu.dot_dimension_numbers<[1], [0], [0], [1], [0, 0, 1, 1], [], []>, precision = #tpu.contract_precision<fp32>} : vector<64x32xf32>, vector<32x16xf32>, vector<64x16xf32> -> vector<64x16xf32>
    %7 = vector.broadcast %2 : vector<1x16xf32> to vector<64x16xf32>
    %8 = arith.addf %6, %7 : vector<64x16xf32>
    %cst_11 = arith.constant 0.000000e+00 : f32
    %9 = vector.broadcast %cst_11 : f32 to vector<64x16xf32>
    %10 = arith.maximumf %8, %9 : vector<64x16xf32>
    %cst_12 = arith.constant dense<0.000000e+00> : vector<64x32xf32>
    %11 = tpu.matmul %10, %3, %cst_12 {dimension_numbers = #tpu.dot_dimension_numbers<[1], [0], [0], [1], [0, 0, 1, 1], [], []>, precision = #tpu.contract_precision<fp32>} : vector<64x16xf32>, vector<16x32xf32>, vector<64x32xf32> -> vector<64x32xf32>
    %12 = vector.broadcast %4 : vector<1x32xf32> to vector<64x32xf32>
    %13 = arith.addf %11, %12 : vector<64x32xf32>
    %14 = vector.shape_cast %13 : vector<64x32xf32> to vector<2x4x8x32xf32>
    %cst_13 = arith.constant dense<0xFF800000> : vector<2x4x32xf32>
    %15 = vector.multi_reduction <maximumf>, %14, %cst_13 [2] : vector<2x4x8x32xf32> to vector<2x4x32xf32>
    %16 = vector.shape_cast %15 : vector<2x4x32xf32> to vector<2x4x1x32xf32>
    %17 = vector.broadcast %16 : vector<2x4x1x32xf32> to vector<2x4x8x32xf32>
    %18 = arith.subf %14, %17 : vector<2x4x8x32xf32>
    %19 = math.exp %18 : vector<2x4x8x32xf32>
    %cst_14 = arith.constant dense<0.000000e+00> : vector<2x4x32xf32>
    %20 = vector.multi_reduction <add>, %19, %cst_14 [2] : vector<2x4x8x32xf32> to vector<2x4x32xf32>
    %21 = vector.shape_cast %20 : vector<2x4x32xf32> to vector<2x4x1x32xf32>
    %cst_15 = arith.constant 1.000000e+00 : f32
    %22 = vector.broadcast %cst_15 : f32 to vector<2x4x1x32xf32>
    %23 = arith.divf %22, %21 : vector<2x4x1x32xf32>
    %24 = vector.broadcast %23 : vector<2x4x1x32xf32> to vector<2x4x8x32xf32>
    %25 = arith.mulf %19, %24 : vector<2x4x8x32xf32>
    %26 = vector.extract_strided_slice %25 {offsets = [0, 0, 0, 0], sizes = [1, 4, 8, 32], strides = [1, 1, 1, 1]} : vector<2x4x8x32xf32> to vector<1x4x8x32xf32>
    %27 = vector.shape_cast %26 : vector<1x4x8x32xf32> to vector<4x8x32xf32>
    %28 = vector.extract_strided_slice %0 {offsets = [0, 0, 0, 0], sizes = [1, 4, 8, 32], strides = [1, 1, 1, 1]} : vector<2x4x8x32xf32> to vector<1x4x8x32xf32>
    %29 = vector.shape_cast %28 : vector<1x4x8x32xf32> to vector<4x8x32xf32>
    %30 = arith.mulf %27, %29 : vector<4x8x32xf32>
    %31 = vector.extract_strided_slice %25 {offsets = [1, 0, 0, 0], sizes = [1, 4, 8, 32], strides = [1, 1, 1, 1]} : vector<2x4x8x32xf32> to vector<1x4x8x32xf32>
    %32 = vector.shape_cast %31 : vector<1x4x8x32xf32> to vector<4x8x32xf32>
    %33 = vector.extract_strided_slice %0 {offsets = [1, 0, 0, 0], sizes = [1, 4, 8, 32], strides = [1, 1, 1, 1]} : vector<2x4x8x32xf32> to vector<1x4x8x32xf32>
    %34 = vector.shape_cast %33 : vector<1x4x8x32xf32> to vector<4x8x32xf32>
    %35 = arith.mulf %32, %34 : vector<4x8x32xf32>
    %36 = arith.addf %30, %35 : vector<4x8x32xf32>
    %37 = vector.shape_cast %36 : vector<4x8x32xf32> to vector<4x256xf32>
    %c0_16 = arith.constant 0 : index
    %c0_17 = arith.constant 0 : index
    %38 = vector.load %arg6[%c0_16, %c0_17] : memref<4x256xf32, #tpu.memory_space<vmem>>, vector<4x256xf32>
    tpu.vector_store %arg6[%c0_16, %c0_17], %37 {strides = array<i32>} : memref<4x256xf32, #tpu.memory_space<vmem>>, vector<4x256xf32>,
    return
  }
  func.func @transform_0(%arg0: i32) -> (i32, i32, i32, i32) {
    %c0_i32 = arith.constant 0 : i32
    %c0_i32_0 = arith.constant 0 : i32
    %c0_i32_1 = arith.constant 0 : i32
    %c0_i32_2 = arith.constant 0 : i32
    return %c0_i32, %arg0, %c0_i32_0, %c0_i32_1 : i32, i32, i32, i32
  }
  func.func @transform_1(%arg0: i32) -> (i32, i32) {
    %c0_i32 = arith.constant 0 : i32
    %c0_i32_0 = arith.constant 0 : i32
    %c0_i32_1 = arith.constant 0 : i32
    return %c0_i32, %c0_i32_0 : i32, i32
  }
  func.func @transform_2(%arg0: i32) -> (i32, i32) {
    %c0_i32 = arith.constant 0 : i32
    %c0_i32_0 = arith.constant 0 : i32
    %c0_i32_1 = arith.constant 0 : i32
    return %c0_i32, %c0_i32_0 : i32, i32
  }
  func.func @transform_3(%arg0: i32) -> (i32, i32) {
    %c0_i32 = arith.constant 0 : i32
    %c0_i32_0 = arith.constant 0 : i32
    %c0_i32_1 = arith.constant 0 : i32
    return %c0_i32, %c0_i32_0 : i32, i32
  }
  func.func @transform_4(%arg0: i32) -> (i32, i32) {
    %c0_i32 = arith.constant 0 : i32
    %c0_i32_0 = arith.constant 0 : i32
    %c0_i32_1 = arith.constant 0 : i32
    return %c0_i32, %c0_i32_0 : i32, i32
  }
  func.func @transform_5(%arg0: i32) -> (i32, i32) {
    %c0_i32 = arith.constant 0 : i32
    %c0_i32_0 = arith.constant 0 : i32
    return %arg0, %c0_i32 : i32, i32
  }
}

</mosaic_0001>

<llo_original>
// kernel: tpu_custom_call.1
$region0: #{tpu_custom_call.1}
  #allocation0 [shape = 'u32[]', space=smem, size = 0x4, offset = 0x4, fixed_abs, tag = 'smem constant byte address 0x4 - core index']
  #allocation1 [shape = 'u32[72,128]{1,0:T(1,128)}', space=vmem, size = 0x9000, scoped, tag = 'internal scratch']
  %s0 = inlined_call_operand.hbm [shape: f32[2,4,8,32], index: 0, kind: input, shape index: {}]
  %s1 = inlined_call_operand.vmem [shape: f32[32,16], index: 1, kind: input, shape index: {}]
  %s2 = inlined_call_operand.vmem [shape: f32[1,16], index: 2, kind: input, shape index: {}]
  %s3 = inlined_call_operand.vmem [shape: f32[16,32], index: 3, kind: input, shape index: {}]
  %s4 = inlined_call_operand.vmem [shape: f32[1,32], index: 4, kind: input, shape index: {}]
  %s5 = inlined_call_operand.hbm [shape: f32[4,256], index: 5, kind: output, shape index: {}]
  %s6 = sld [smem:[#allocation0]]
  $region34: #{tpu_custom_call.1} parent=0
    _
  %s8 = ssub.s32 1, %s6
  %s9 = scalar_select 0, %s8, %s6
  $region1: #{tpu_custom_call.1} parent=0
    #allocation2 [shape = 'u8[32768]{0}', space=vmem, size = 0x8000, scoped, tag = 'input window, operand 0, single buffered']
    #allocation3 [shape = 's32[1]{0}', space=sflag, size = 0x4, scoped, tag = 'scoped memory for tpu_custom_call.1']
    #allocation4 [shape = 's32[1]{0}', space=sflag, size = 0x4, scoped, tag = 'scoped memory for tpu_custom_call.1']
    #allocation5 [shape = 'u8[4096]{0}', space=vmem, size = 0x1000, scoped, tag = 'output window, operand 0, single buffered']
    %10 = vsyncpa [#allocation3], 0
    %11 = vsyncpa [#allocation4], 0
    // Predicated region
    $region2: #{tpu_custom_call.1} parent=1 // pred_check
      _
    $region3: #{tpu_custom_call.1} parent=1 // pred_check_branch
      %13 = sbr.rel (0) target = $region5
    $region4: #{tpu_custom_call.1} parent=1 // pred_region
      %15 = vsyncadd [#allocation3], 0
      %s16 = sshll.u32 %s0, 4
      %s17 = int_to_ptr.hbm [resolvable:$true] %s16
      %s18 = sshll.u32 [#allocation2], 4
      %s19 = int_to_ptr.vmem [resolvable:$true] %s18
      %24 = dma.hbm_to_vmem [thread:$0]  %s17, 1024, %s19, [#allocation3], 128, 128, 8
    $region5: #{tpu_custom_call.1} parent=1 // pred_fallthru
      _
    // Predicated region
    $region6: #{tpu_custom_call.1} parent=1 // pred_check
      _
    $region7: #{tpu_custom_call.1} parent=1 // pred_check_branch
      %26 = sbr.rel (0) target = $region9
    $region8: #{tpu_custom_call.1} parent=1 // pred_region
      _
    $region9: #{tpu_custom_call.1} parent=1 // pred_fallthru
      _
    // Predicated region
    $region10: #{tpu_custom_call.1} parent=1 // pred_check
      _
    $region11: #{tpu_custom_call.1} parent=1 // pred_check_branch
      %28 = sbr.rel (0) target = $region13
    $region12: #{tpu_custom_call.1} parent=1 // pred_region
      _
    $region13: #{tpu_custom_call.1} parent=1 // pred_fallthru
      _
    // Predicated region
    $region14: #{tpu_custom_call.1} parent=1 // pred_check
      _
    $region15: #{tpu_custom_call.1} parent=1 // pred_check_branch
      %30 = sbr.rel (0) target = $region17
    $region16: #{tpu_custom_call.1} parent=1 // pred_region
      _
    $region17: #{tpu_custom_call.1} parent=1 // pred_fallthru
      _
    // Predicated region
    $region18: #{tpu_custom_call.1} parent=1 // pred_check
      _
    $region19: #{tpu_custom_call.1} parent=1 // pred_check_branch
      %32 = sbr.rel (0) target = $region21
    $region20: #{tpu_custom_call.1} parent=1 // pred_region
      _
    $region21: #{tpu_custom_call.1} parent=1 // pred_fallthru
      _
    // Predicated region
    $region22: #{tpu_custom_call.1} parent=1 // pred_check
      _
    $region23: #{tpu_custom_call.1} parent=1 // pred_check_branch
      %34 = sbr.rel (0) target = $region25
    $region24: #{tpu_custom_call.1} parent=1 // pred_region
      %36 = dma.done [#allocation3], 1024
    $region25: #{tpu_custom_call.1} parent=1 // pred_fallthru
      _
    %v37 = vld [vmem:[#allocation2] sm:$0xff]
    %v38 = vld [vmem:[#allocation2 + $0x8] sm:$0xff]
    %v39 = vld [vmem:[#allocation2 + $0x10] sm:$0xff]
    %v40 = vld [vmem:[#allocation2 + $0x18] sm:$0xff]
    %v41 = vld [vmem:[#allocation2 + $0x20] sm:$0xff]
    %v42 = vld [vmem:[#allocation2 + $0x28] sm:$0xff]
    %v43 = vld [vmem:[#allocation2 + $0x30] sm:$0xff]
    %v44 = vld [vmem:[#allocation2 + $0x38] sm:$0xff]
    %v45 = vld [vmem:[%s1] sm:$0xff]
    %v46 = vld [vmem:[%s1 + $0x8] sm:$0xff]
    %v47 = vld [vmem:[%s1 + $0x10] sm:$0xff]
    %v48 = vld [vmem:[%s1 + $0x18] sm:$0xff]
    %v49 = vld [vmem:[%s2] sm:$0x1]
    %v50 = vld [vmem:[%s3] sm:$0xff]
    %v51 = vld [vmem:[%s3 + $0x8] sm:$0xff]
    %v52 = vld [vmem:[%s4] sm:$0x1]
    %v54 = vperm.slane %v49, 0
    %vm56 = vcmask 261120
    %v58 = vsel %vm56, %v37, 0
    %v61 = vsel %vm56, %v38, 0
    %v64 = vsel %vm56, %v39, 0
    %v67 = vsel %vm56, %v40, 0
    %v70 = vsel %vm56, %v41, 0
    %v73 = vsel %vm56, %v42, 0
    %v76 = vsel %vm56, %v43, 0
    %v79 = vsel %vm56, %v44, 0
    %81 = vmatpush.msra.mxu0 0.0
    %82 = vmatpush.msra.mxu0 0.0
    %83 = vmatpush.msra.mxu0 0.0
    %84 = vmatpush.msra.mxu0 0.0
    %85 = vmatpush.msra.mxu0 0.0
    %86 = vmatpush.msra.mxu0 0.0
    %87 = vmatpush.msra.mxu0 0.0
    %88 = vmatpush.msra.mxu0 0.0
    %89 = vmatpush.msra.mxu0 0.0
    %90 = vmatpush.msra.mxu0 0.0
    %91 = vmatpush.msra.mxu0 0.0
    %92 = vmatpush.msra.mxu0 0.0
    %v93 = vand.u32 %v48, 4294901760
    %94 = vmatpush.msra.mxu0 %v93
    %v95 = vand.u32 %v47, 4294901760
    %96 = vmatpush.msra.mxu0 %v95
    %v97 = vand.u32 %v46, 4294901760
    %98 = vmatpush.msra.mxu0 %v97
    %v99 = vand.u32 %v45, 4294901760
    %100 = vmatpush.msra.mxu0 %v99
    %v101 = vand.u32 %v58, 4294901760
    %v102 = vsub.f32 %v58, %v101
    %v103 = vand.u32 %v102, 4294901760
    %v104 = vsub.f32 %v102, %v103
    %v105 = vand.u32 %v104, 4294901760
    %106 = vmatmul.f32.gmra.mxu0 %v105
    %v107 = vpop.f32.mrf.mxu0
    %v108 = vadd.f32 %v54, %v107
    %v109 = vand.u32 %v61, 4294901760
    %v110 = vsub.f32 %v61, %v109
    %v111 = vand.u32 %v110, 4294901760
    %v112 = vsub.f32 %v110, %v111
    %v113 = vand.u32 %v112, 4294901760
    %114 = vmatmul.f32.gmra.mxu0 %v113
    %v115 = vpop.f32.mrf.mxu0
    %v116 = vadd.f32 %v54, %v115
    %v117 = vand.u32 %v64, 4294901760
    %v118 = vsub.f32 %v64, %v117
    %v119 = vand.u32 %v118, 4294901760
    %v120 = vsub.f32 %v118, %v119
    %v121 = vand.u32 %v120, 4294901760
    %122 = vmatmul.f32.gmra.mxu0 %v121
    %v123 = vpop.f32.mrf.mxu0
    %v124 = vadd.f32 %v54, %v123
    %v125 = vand.u32 %v67, 4294901760
    %v126 = vsub.f32 %v67, %v125
    %v127 = vand.u32 %v126, 4294901760
    %v128 = vsub.f32 %v126, %v127
    %v129 = vand.u32 %v128, 4294901760
    %130 = vmatmul.f32.gmra.mxu0 %v129
    %v131 = vpop.f32.mrf.mxu0
    %v132 = vadd.f32 %v54, %v131
    %v133 = vand.u32 %v70, 4294901760
    %v134 = vsub.f32 %v70, %v133
    %v135 = vand.u32 %v134, 4294901760
    %v136 = vsub.f32 %v134, %v135
    %v137 = vand.u32 %v136, 4294901760
    %138 = vmatmul.f32.gmra.mxu0 %v137
    %v139 = vpop.f32.mrf.mxu0
    %v140 = vadd.f32 %v54, %v139
    %v141 = vand.u32 %v73, 4294901760
    %v142 = vsub.f32 %v73, %v141
    %v143 = vand.u32 %v142, 4294901760
    %v144 = vsub.f32 %v142, %v143
    %v145 = vand.u32 %v144, 4294901760
    %146 = vmatmul.f32.gmra.mxu0 %v145
    %v147 = vpop.f32.mrf.mxu0
    %v148 = vadd.f32 %v54, %v147
    %v149 = vand.u32 %v76, 4294901760
    %v150 = vsub.f32 %v76, %v149
    %v151 = vand.u32 %v150, 4294901760
    %v152 = vsub.f32 %v150, %v151
    %v153 = vand.u32 %v152, 4294901760
    %154 = vmatmul.f32.gmra.mxu0 %v153
    %v155 = vpop.f32.mrf.mxu0
    %v156 = vadd.f32 %v54, %v155
    %v157 = vand.u32 %v79, 4294901760
    %v158 = vsub.f32 %v79, %v157
    %v159 = vand.u32 %v158, 4294901760
    %v160 = vsub.f32 %v158, %v159
    %v161 = vand.u32 %v160, 4294901760
    %162 = vmatmul.f32.gmra.mxu0 %v161
    %v163 = vpop.f32.mrf.mxu0
    %v164 = vadd.f32 %v54, %v163
    %165 = vdwg.mxu0
    %166 = vmatpush.msra.mxu0 0.0
    %167 = vmatpush.msra.mxu0 0.0
    %168 = vmatpush.msra.mxu0 0.0
    %169 = vmatpush.msra.mxu0 0.0
    %170 = vmatpush.msra.mxu0 0.0
    %171 = vmatpush.msra.mxu0 0.0
    %172 = vmatpush.msra.mxu0 0.0
    %173 = vmatpush.msra.mxu0 0.0
    %174 = vmatpush.msra.mxu0 0.0
    %175 = vmatpush.msra.mxu0 0.0
    %176 = vmatpush.msra.mxu0 0.0
    %177 = vmatpush.msra.mxu0 0.0
    %v178 = vand.u32 %v48, 4294901760
    %v179 = vsub.f32 %v48, %v178
    %v180 = vand.u32 %v179, 4294901760
    %v181 = vsub.f32 %v179, %v180
    %v182 = vand.u32 %v181, 4294901760
    %183 = vmatpush.msra.mxu0 %v182
    %v184 = vand.u32 %v47, 4294901760
    %v185 = vsub.f32 %v47, %v184
    %v186 = vand.u32 %v185, 4294901760
    %v187 = vsub.f32 %v185, %v186
    %v188 = vand.u32 %v187, 4294901760
    %189 = vmatpush.msra.mxu0 %v188
    %v190 = vand.u32 %v46, 4294901760
    %v191 = vsub.f32 %v46, %v190
    %v192 = vand.u32 %v191, 4294901760
    %v193 = vsub.f32 %v191, %v192
    %v194 = vand.u32 %v193, 4294901760
    %195 = vmatpush.msra.mxu0 %v194
    %v196 = vand.u32 %v45, 4294901760
    %v197 = vsub.f32 %v45, %v196
    %v198 = vand.u32 %v197, 4294901760
    %v199 = vsub.f32 %v197, %v198
    %v200 = vand.u32 %v199, 4294901760
    %201 = vmatpush.msra.mxu0 %v200
    %v202 = vand.u32 %v58, 4294901760
    %203 = vmatmul.f32.gmra.mxu0 %v202
    %v204 = vpop.f32.mrf.mxu0
    %v205 = vadd.f32 %v108, %v204
    %v206 = vand.u32 %v61, 4294901760
    %207 = vmatmul.f32.gmra.mxu0 %v206
    %v208 = vpop.f32.mrf.mxu0
    %v209 = vadd.f32 %v116, %v208
    %v210 = vand.u32 %v64, 4294901760
    %211 = vmatmul.f32.gmra.mxu0 %v210
    %v212 = vpop.f32.mrf.mxu0
    %v213 = vadd.f32 %v124, %v212
    %v214 = vand.u32 %v67, 4294901760
    %215 = vmatmul.f32.gmra.mxu0 %v214
    %v216 = vpop.f32.mrf.mxu0
    %v217 = vadd.f32 %v132, %v216
    %v218 = vand.u32 %v70, 4294901760
    %219 = vmatmul.f32.gmra.mxu0 %v218
    %v220 = vpop.f32.mrf.mxu0
    %v221 = vadd.f32 %v140, %v220
    %v222 = vand.u32 %v73, 4294901760
    %223 = vmatmul.f32.gmra.mxu0 %v222
    %v224 = vpop.f32.mrf.mxu0
    %v225 = vadd.f32 %v148, %v224
    %v226 = vand.u32 %v76, 4294901760
    %227 = vmatmul.f32.gmra.mxu0 %v226
    %v228 = vpop.f32.mrf.mxu0
    %v229 = vadd.f32 %v156, %v228
    %v230 = vand.u32 %v79, 4294901760
    %231 = vmatmul.f32.gmra.mxu0 %v230
    %v232 = vpop.f32.mrf.mxu0
    %v233 = vadd.f32 %v164, %v232
    %234 = vdwg.mxu0
    %235 = vmatpush.msra.mxu0 0.0
    %236 = vmatpush.msra.mxu0 0.0
    %237 = vmatpush.msra.mxu0 0.0
    %238 = vmatpush.msra.mxu0 0.0
    %239 = vmatpush.msra.mxu0 0.0
    %240 = vmatpush.msra.mxu0 0.0
    %241 = vmatpush.msra.mxu0 0.0
    %242 = vmatpush.msra.mxu0 0.0
    %243 = vmatpush.msra.mxu0 0.0
    %244 = vmatpush.msra.mxu0 0.0
    %245 = vmatpush.msra.mxu0 0.0
    %246 = vmatpush.msra.mxu0 0.0
    %v247 = vand.u32 %v48, 4294901760
    %v248 = vsub.f32 %v48, %v247
    %249 = vmatpush.msra.mxu0 %v248
    %v250 = vand.u32 %v47, 4294901760
    %v251 = vsub.f32 %v47, %v250
    %252 = vmatpush.msra.mxu0 %v251
    %v253 = vand.u32 %v46, 4294901760
    %v254 = vsub.f32 %v46, %v253
    %255 = vmatpush.msra.mxu0 %v254
    %v256 = vand.u32 %v45, 4294901760
    %v257 = vsub.f32 %v45, %v256
    %258 = vmatpush.msra.mxu0 %v257
    %v259 = vand.u32 %v58, 4294901760
    %v260 = vsub.f32 %v58, %v259
    %261 = vmatmul.f32.gmra.mxu0 %v260
    %v262 = vpop.f32.mrf.mxu0
    %v263 = vadd.f32 %v205, %v262
    %v264 = vand.u32 %v61, 4294901760
    %v265 = vsub.f32 %v61, %v264
    %266 = vmatmul.f32.gmra.mxu0 %v265
    %v267 = vpop.f32.mrf.mxu0
    %v268 = vadd.f32 %v209, %v267
    %v269 = vand.u32 %v64, 4294901760
    %v270 = vsub.f32 %v64, %v269
    %271 = vmatmul.f32.gmra.mxu0 %v270
    %v272 = vpop.f32.mrf.mxu0
    %v273 = vadd.f32 %v213, %v272
    %v274 = vand.u32 %v67, 4294901760
    %v275 = vsub.f32 %v67, %v274
    %276 = vmatmul.f32.gmra.mxu0 %v275
    %v277 = vpop.f32.mrf.mxu0
    %v278 = vadd.f32 %v217, %v277
    %v279 = vand.u32 %v70, 4294901760
    %v280 = vsub.f32 %v70, %v279
    %281 = vmatmul.f32.gmra.mxu0 %v280
    %v282 = vpop.f32.mrf.mxu0
    %v283 = vadd.f32 %v221, %v282
    %v284 = vand.u32 %v73, 4294901760
    %v285 = vsub.f32 %v73, %v284
    %286 = vmatmul.f32.gmra.mxu0 %v285
    %v287 = vpop.f32.mrf.mxu0
    %v288 = vadd.f32 %v225, %v287
    %v289 = vand.u32 %v76, 4294901760
    %v290 = vsub.f32 %v76, %v289
    %291 = vmatmul.f32.gmra.mxu0 %v290
    %v292 = vpop.f32.mrf.mxu0
    %v293 = vadd.f32 %v229, %v292
    %v294 = vand.u32 %v79, 4294901760
    %v295 = vsub.f32 %v79, %v294
    %296 = vmatmul.f32.gmra.mxu0 %v295
    %v297 = vpop.f32.mrf.mxu0
    %v298 = vadd.f32 %v233, %v297
    %299 = vdwg.mxu0
    %300 = vmatpush.msra.mxu0 0.0
    %301 = vmatpush.msra.mxu0 0.0
    %302 = vmatpush.msra.mxu0 0.0
    %303 = vmatpush.msra.mxu0 0.0
    %304 = vmatpush.msra.mxu0 0.0
    %305 = vmatpush.msra.mxu0 0.0
    %306 = vmatpush.msra.mxu0 0.0
    %307 = vmatpush.msra.mxu0 0.0
    %308 = vmatpush.msra.mxu0 0.0
    %309 = vmatpush.msra.mxu0 0.0
    %310 = vmatpush.msra.mxu0 0.0
    %311 = vmatpush.msra.mxu0 0.0
    %v312 = vand.u32 %v48, 4294901760
    %313 = vmatpush.msra.mxu0 %v312
    %v314 = vand.u32 %v47, 4294901760
    %315 = vmatpush.msra.mxu0 %v314
    %v316 = vand.u32 %v46, 4294901760
    %317 = vmatpush.msra.mxu0 %v316
    %v318 = vand.u32 %v45, 4294901760
    %319 = vmatpush.msra.mxu0 %v318
    %v320 = vand.u32 %v58, 4294901760
    %v321 = vsub.f32 %v58, %v320
    %v322 = vand.u32 %v321, 4294901760
    %323 = vmatmul.f32.gmra.mxu0 %v322
    %v324 = vpop.f32.mrf.mxu0
    %v325 = vadd.f32 %v263, %v324
    %v326 = vand.u32 %v61, 4294901760
    %v327 = vsub.f32 %v61, %v326
    %v328 = vand.u32 %v327, 4294901760
    %329 = vmatmul.f32.gmra.mxu0 %v328
    %v330 = vpop.f32.mrf.mxu0
    %v331 = vadd.f32 %v268, %v330
    %v332 = vand.u32 %v64, 4294901760
    %v333 = vsub.f32 %v64, %v332
    %v334 = vand.u32 %v333, 4294901760
    %335 = vmatmul.f32.gmra.mxu0 %v334
    %v336 = vpop.f32.mrf.mxu0
    %v337 = vadd.f32 %v273, %v336
    %v338 = vand.u32 %v67, 4294901760
    %v339 = vsub.f32 %v67, %v338
    %v340 = vand.u32 %v339, 4294901760
    %341 = vmatmul.f32.gmra.mxu0 %v340
    %v342 = vpop.f32.mrf.mxu0
    %v343 = vadd.f32 %v278, %v342
    %v344 = vand.u32 %v70, 4294901760
    %v345 = vsub.f32 %v70, %v344
    %v346 = vand.u32 %v345, 4294901760
    %347 = vmatmul.f32.gmra.mxu0 %v346
    %v348 = vpop.f32.mrf.mxu0
    %v349 = vadd.f32 %v283, %v348
    %v350 = vand.u32 %v73, 4294901760
    %v351 = vsub.f32 %v73, %v350
    %v352 = vand.u32 %v351, 4294901760
    %353 = vmatmul.f32.gmra.mxu0 %v352
    %v354 = vpop.f32.mrf.mxu0
    %v355 = vadd.f32 %v288, %v354
    %v356 = vand.u32 %v76, 4294901760
    %v357 = vsub.f32 %v76, %v356
    %v358 = vand.u32 %v357, 4294901760
    %359 = vmatmul.f32.gmra.mxu0 %v358
    %v360 = vpop.f32.mrf.mxu0
    %v361 = vadd.f32 %v293, %v360
    %v362 = vand.u32 %v79, 4294901760
    %v363 = vsub.f32 %v79, %v362
    %v364 = vand.u32 %v363, 4294901760
    %365 = vmatmul.f32.gmra.mxu0 %v364
    %v366 = vpop.f32.mrf.mxu0
    %v367 = vadd.f32 %v298, %v366
    %368 = vdwg.mxu0
    %369 = vmatpush.msra.mxu0 0.0
    %370 = vmatpush.msra.mxu0 0.0
    %371 = vmatpush.msra.mxu0 0.0
    %372 = vmatpush.msra.mxu0 0.0
    %373 = vmatpush.msra.mxu0 0.0
    %374 = vmatpush.msra.mxu0 0.0
    %375 = vmatpush.msra.mxu0 0.0
    %376 = vmatpush.msra.mxu0 0.0
    %377 = vmatpush.msra.mxu0 0.0
    %378 = vmatpush.msra.mxu0 0.0
    %379 = vmatpush.msra.mxu0 0.0
    %380 = vmatpush.msra.mxu0 0.0
    %v381 = vand.u32 %v48, 4294901760
    %v382 = vsub.f32 %v48, %v381
    %v383 = vand.u32 %v382, 4294901760
    %384 = vmatpush.msra.mxu0 %v383
    %v385 = vand.u32 %v47, 4294901760
    %v386 = vsub.f32 %v47, %v385
    %v387 = vand.u32 %v386, 4294901760
    %388 = vmatpush.msra.mxu0 %v387
    %v389 = vand.u32 %v46, 4294901760
    %v390 = vsub.f32 %v46, %v389
    %v391 = vand.u32 %v390, 4294901760
    %392 = vmatpush.msra.mxu0 %v391
    %v393 = vand.u32 %v45, 4294901760
    %v394 = vsub.f32 %v45, %v393
    %v395 = vand.u32 %v394, 4294901760
    %396 = vmatpush.msra.mxu0 %v395
    %v397 = vand.u32 %v58, 4294901760
    %398 = vmatmul.f32.gmra.mxu0 %v397
    %v399 = vpop.f32.mrf.mxu0
    %v400 = vadd.f32 %v325, %v399
    %v401 = vand.u32 %v61, 4294901760
    %402 = vmatmul.f32.gmra.mxu0 %v401
    %v403 = vpop.f32.mrf.mxu0
    %v404 = vadd.f32 %v331, %v403
    %v405 = vand.u32 %v64, 4294901760
    %406 = vmatmul.f32.gmra.mxu0 %v405
    %v407 = vpop.f32.mrf.mxu0
    %v408 = vadd.f32 %v337, %v407
    %v409 = vand.u32 %v67, 4294901760
    %410 = vmatmul.f32.gmra.mxu0 %v409
    %v411 = vpop.f32.mrf.mxu0
    %v412 = vadd.f32 %v343, %v411
    %v413 = vand.u32 %v70, 4294901760
    %414 = vmatmul.f32.gmra.mxu0 %v413
    %v415 = vpop.f32.mrf.mxu0
    %v416 = vadd.f32 %v349, %v415
    %v417 = vand.u32 %v73, 4294901760
    %418 = vmatmul.f32.gmra.mxu0 %v417
    %v419 = vpop.f32.mrf.mxu0
    %v420 = vadd.f32 %v355, %v419
    %v421 = vand.u32 %v76, 4294901760
    %422 = vmatmul.f32.gmra.mxu0 %v421
    %v423 = vpop.f32.mrf.mxu0
    %v424 = vadd.f32 %v361, %v423
    %v425 = vand.u32 %v79, 4294901760
    %426 = vmatmul.f32.gmra.mxu0 %v425
    %v427 = vpop.f32.mrf.mxu0
    %v428 = vadd.f32 %v367, %v427
    %429 = vdwg.mxu0
    %430 = vmatpush.msra.mxu0 0.0
    %431 = vmatpush.msra.mxu0 0.0
    %432 = vmatpush.msra.mxu0 0.0
    %433 = vmatpush.msra.mxu0 0.0
    %434 = vmatpush.msra.mxu0 0.0
    %435 = vmatpush.msra.mxu0 0.0
    %436 = vmatpush.msra.mxu0 0.0
    %437 = vmatpush.msra.mxu0 0.0
    %438 = vmatpush.msra.mxu0 0.0
    %439 = vmatpush.msra.mxu0 0.0
    %440 = vmatpush.msra.mxu0 0.0
    %441 = vmatpush.msra.mxu0 0.0
    %v442 = vand.u32 %v48, 4294901760
    %443 = vmatpush.msra.mxu0 %v442
    %v444 = vand.u32 %v47, 4294901760
    %445 = vmatpush.msra.mxu0 %v444
    %v446 = vand.u32 %v46, 4294901760
    %447 = vmatpush.msra.mxu0 %v446
    %v448 = vand.u32 %v45, 4294901760
    %449 = vmatpush.msra.mxu0 %v448
    %v450 = vand.u32 %v58, 4294901760
    %451 = vmatmul.f32.gmra.mxu0 %v450
    %v452 = vpop.f32.mrf.mxu0
    %v453 = vadd.f32 %v400, %v452
    %v454 = vand.u32 %v61, 4294901760
    %455 = vmatmul.f32.gmra.mxu0 %v454
    %v456 = vpop.f32.mrf.mxu0
    %v457 = vadd.f32 %v404, %v456
    %v458 = vand.u32 %v64, 4294901760
    %459 = vmatmul.f32.gmra.mxu0 %v458
    %v460 = vpop.f32.mrf.mxu0
    %v461 = vadd.f32 %v408, %v460
    %v462 = vand.u32 %v67, 4294901760
    %463 = vmatmul.f32.gmra.mxu0 %v462
    %v464 = vpop.f32.mrf.mxu0
    %v465 = vadd.f32 %v412, %v464
    %v466 = vand.u32 %v70, 4294901760
    %467 = vmatmul.f32.gmra.mxu0 %v466
    %v468 = vpop.f32.mrf.mxu0
    %v469 = vadd.f32 %v416, %v468
    %v470 = vand.u32 %v73, 4294901760
    %471 = vmatmul.f32.gmra.mxu0 %v470
    %v472 = vpop.f32.mrf.mxu0
    %v473 = vadd.f32 %v420, %v472
    %v474 = vand.u32 %v76, 4294901760
    %475 = vmatmul.f32.gmra.mxu0 %v474
    %v476 = vpop.f32.mrf.mxu0
    %v477 = vadd.f32 %v424, %v476
    %v478 = vand.u32 %v79, 4294901760
    %479 = vmatmul.f32.gmra.mxu0 %v478
    %v480 = vpop.f32.mrf.mxu0
    %v481 = vadd.f32 %v428, %v480
    %482 = vdwg.mxu0
    %v483 = vmax.f32 %v453, 0.0
    %v484 = vmax.f32 %v457, 0.0
    %v485 = vmax.f32 %v461, 0.0
    %v486 = vmax.f32 %v465, 0.0
    %v487 = vmax.f32 %v469, 0.0
    %v488 = vmax.f32 %v473, 0.0
    %v489 = vmax.f32 %v477, 0.0
    %v490 = vmax.f32 %v481, 0.0
    %v492 = vperm.slane %v52, 0
    %vm494 = vcmask 130048
    %v496 = vsel %vm494, %v483, 0
    %v499 = vsel %vm494, %v484, 0
    %v502 = vsel %vm494, %v485, 0
    %v505 = vsel %vm494, %v486, 0
    %v508 = vsel %vm494, %v487, 0
    %v511 = vsel %vm494, %v488, 0
    %v514 = vsel %vm494, %v489, 0
    %v517 = vsel %vm494, %v490, 0
    %519 = vmatpush.msra.mxu0 0.0
    %520 = vmatpush.msra.mxu0 0.0
    %521 = vmatpush.msra.mxu0 0.0
    %522 = vmatpush.msra.mxu0 0.0
    %523 = vmatpush.msra.mxu0 0.0
    %524 = vmatpush.msra.mxu0 0.0
    %525 = vmatpush.msra.mxu0 0.0
    %526 = vmatpush.msra.mxu0 0.0
    %527 = vmatpush.msra.mxu0 0.0
    %528 = vmatpush.msra.mxu0 0.0
    %529 = vmatpush.msra.mxu0 0.0
    %530 = vmatpush.msra.mxu0 0.0
    %531 = vmatpush.msra.mxu0 0.0
    %532 = vmatpush.msra.mxu0 0.0
    %v533 = vand.u32 %v51, 4294901760
    %534 = vmatpush.msra.mxu0 %v533
    %v535 = vand.u32 %v50, 4294901760
    %536 = vmatpush.msra.mxu0 %v535
    %v537 = vand.u32 %v496, 4294901760
    %v538 = vsub.f32 %v496, %v537
    %v539 = vand.u32 %v538, 4294901760
    %v540 = vsub.f32 %v538, %v539
    %v541 = vand.u32 %v540, 4294901760
    %542 = vmatmul.f32.gmra.mxu0 %v541
    %v543 = vpop.f32.mrf.mxu0
    %v544 = vadd.f32 %v492, %v543
    %v545 = vand.u32 %v499, 4294901760
    %v546 = vsub.f32 %v499, %v545
    %v547 = vand.u32 %v546, 4294901760
    %v548 = vsub.f32 %v546, %v547
    %v549 = vand.u32 %v548, 4294901760
    %550 = vmatmul.f32.gmra.mxu0 %v549
    %v551 = vpop.f32.mrf.mxu0
    %v552 = vadd.f32 %v492, %v551
    %v553 = vand.u32 %v502, 4294901760
    %v554 = vsub.f32 %v502, %v553
    %v555 = vand.u32 %v554, 4294901760
    %v556 = vsub.f32 %v554, %v555
    %v557 = vand.u32 %v556, 4294901760
    %558 = vmatmul.f32.gmra.mxu0 %v557
    %v559 = vpop.f32.mrf.mxu0
    %v560 = vadd.f32 %v492, %v559
    %v561 = vand.u32 %v505, 4294901760
    %v562 = vsub.f32 %v505, %v561
    %v563 = vand.u32 %v562, 4294901760
    %v564 = vsub.f32 %v562, %v563
    %v565 = vand.u32 %v564, 4294901760
    %566 = vmatmul.f32.gmra.mxu0 %v565
    %v567 = vpop.f32.mrf.mxu0
    %v568 = vadd.f32 %v492, %v567
    %v569 = vand.u32 %v508, 4294901760
    %v570 = vsub.f32 %v508, %v569
    %v571 = vand.u32 %v570, 4294901760
    %v572 = vsub.f32 %v570, %v571
    %v573 = vand.u32 %v572, 4294901760
    %574 = vmatmul.f32.gmra.mxu0 %v573
    %v575 = vpop.f32.mrf.mxu0
    %v576 = vadd.f32 %v492, %v575
    %v577 = vand.u32 %v511, 4294901760
    %v578 = vsub.f32 %v511, %v577
    %v579 = vand.u32 %v578, 4294901760
    %v580 = vsub.f32 %v578, %v579
    %v581 = vand.u32 %v580, 4294901760
    %582 = vmatmul.f32.gmra.mxu0 %v581
    %v583 = vpop.f32.mrf.mxu0
    %v584 = vadd.f32 %v492, %v583
    %v585 = vand.u32 %v514, 4294901760
    %v586 = vsub.f32 %v514, %v585
    %v587 = vand.u32 %v586, 4294901760
    %v588 = vsub.f32 %v586, %v587
    %v589 = vand.u32 %v588, 4294901760
    %590 = vmatmul.f32.gmra.mxu0 %v589
    %v591 = vpop.f32.mrf.mxu0
    %v592 = vadd.f32 %v492, %v591
    %v593 = vand.u32 %v517, 4294901760
    %v594 = vsub.f32 %v517, %v593
    %v595 = vand.u32 %v594, 4294901760
    %v596 = vsub.f32 %v594, %v595
    %v597 = vand.u32 %v596, 4294901760
    %598 = vmatmul.f32.gmra.mxu0 %v597
    %v599 = vpop.f32.mrf.mxu0
    %v600 = vadd.f32 %v492, %v599
    %601 = vdwg.mxu0
    %602 = vmatpush.msra.mxu0 0.0
    %603 = vmatpush.msra.mxu0 0.0
    %604 = vmatpush.msra.mxu0 0.0
    %605 = vmatpush.msra.mxu0 0.0
    %606 = vmatpush.msra.mxu0 0.0
    %607 = vmatpush.msra.mxu0 0.0
    %608 = vmatpush.msra.mxu0 0.0
    %609 = vmatpush.msra.mxu0 0.0
    %610 = vmatpush.msra.mxu0 0.0
    %611 = vmatpush.msra.mxu0 0.0
    %612 = vmatpush.msra.mxu0 0.0
    %613 = vmatpush.msra.mxu0 0.0
    %614 = vmatpush.msra.mxu0 0.0
    %615 = vmatpush.msra.mxu0 0.0
    %v616 = vand.u32 %v51, 4294901760
    %v617 = vsub.f32 %v51, %v616
    %v618 = vand.u32 %v617, 4294901760
    %v619 = vsub.f32 %v617, %v618
    %v620 = vand.u32 %v619, 4294901760
    %621 = vmatpush.msra.mxu0 %v620
    %v622 = vand.u32 %v50, 4294901760
    %v623 = vsub.f32 %v50, %v622
    %v624 = vand.u32 %v623, 4294901760
    %v625 = vsub.f32 %v623, %v624
    %v626 = vand.u32 %v625, 4294901760
    %627 = vmatpush.msra.mxu0 %v626
    %v628 = vand.u32 %v496, 4294901760
    %629 = vmatmul.f32.gmra.mxu0 %v628
    %v630 = vpop.f32.mrf.mxu0
    %v631 = vadd.f32 %v544, %v630
    %v632 = vand.u32 %v499, 4294901760
    %633 = vmatmul.f32.gmra.mxu0 %v632
    %v634 = vpop.f32.mrf.mxu0
    %v635 = vadd.f32 %v552, %v634
    %v636 = vand.u32 %v502, 4294901760
    %637 = vmatmul.f32.gmra.mxu0 %v636
    %v638 = vpop.f32.mrf.mxu0
    %v639 = vadd.f32 %v560, %v638
    %v640 = vand.u32 %v505, 4294901760
    %641 = vmatmul.f32.gmra.mxu0 %v640
    %v642 = vpop.f32.mrf.mxu0
    %v643 = vadd.f32 %v568, %v642
    %v644 = vand.u32 %v508, 4294901760
    %645 = vmatmul.f32.gmra.mxu0 %v644
    %v646 = vpop.f32.mrf.mxu0
    %v647 = vadd.f32 %v576, %v646
    %v648 = vand.u32 %v511, 4294901760
    %649 = vmatmul.f32.gmra.mxu0 %v648
    %v650 = vpop.f32.mrf.mxu0
    %v651 = vadd.f32 %v584, %v650
    %v652 = vand.u32 %v514, 4294901760
    %653 = vmatmul.f32.gmra.mxu0 %v652
    %v654 = vpop.f32.mrf.mxu0
    %v655 = vadd.f32 %v592, %v654
    %v656 = vand.u32 %v517, 4294901760
    %657 = vmatmul.f32.gmra.mxu0 %v656
    %v658 = vpop.f32.mrf.mxu0
    %v659 = vadd.f32 %v600, %v658
    %660 = vdwg.mxu0
    %661 = vmatpush.msra.mxu0 0.0
    %662 = vmatpush.msra.mxu0 0.0
    %663 = vmatpush.msra.mxu0 0.0
    %664 = vmatpush.msra.mxu0 0.0
    %665 = vmatpush.msra.mxu0 0.0
    %666 = vmatpush.msra.mxu0 0.0
    %667 = vmatpush.msra.mxu0 0.0
    %668 = vmatpush.msra.mxu0 0.0
    %669 = vmatpush.msra.mxu0 0.0
    %670 = vmatpush.msra.mxu0 0.0
    %671 = vmatpush.msra.mxu0 0.0
    %672 = vmatpush.msra.mxu0 0.0
    %673 = vmatpush.msra.mxu0 0.0
    %674 = vmatpush.msra.mxu0 0.0
    %v675 = vand.u32 %v51, 4294901760
    %v676 = vsub.f32 %v51, %v675
    %677 = vmatpush.msra.mxu0 %v676
    %v678 = vand.u32 %v50, 4294901760
    %v679 = vsub.f32 %v50, %v678
    %680 = vmatpush.msra.mxu0 %v679
    %v681 = vand.u32 %v496, 4294901760
    %v682 = vsub.f32 %v496, %v681
    %683 = vmatmul.f32.gmra.mxu0 %v682
    %v684 = vpop.f32.mrf.mxu0
    %v685 = vadd.f32 %v631, %v684
    %v686 = vand.u32 %v499, 4294901760
    %v687 = vsub.f32 %v499, %v686
    %688 = vmatmul.f32.gmra.mxu0 %v687
    %v689 = vpop.f32.mrf.mxu0
    %v690 = vadd.f32 %v635, %v689
    %v691 = vand.u32 %v502, 4294901760
    %v692 = vsub.f32 %v502, %v691
    %693 = vmatmul.f32.gmra.mxu0 %v692
    %v694 = vpop.f32.mrf.mxu0
    %v695 = vadd.f32 %v639, %v694
    %v696 = vand.u32 %v505, 4294901760
    %v697 = vsub.f32 %v505, %v696
    %698 = vmatmul.f32.gmra.mxu0 %v697
    %v699 = vpop.f32.mrf.mxu0
    %v700 = vadd.f32 %v643, %v699
    %v701 = vand.u32 %v508, 4294901760
    %v702 = vsub.f32 %v508, %v701
    %703 = vmatmul.f32.gmra.mxu0 %v702
    %v704 = vpop.f32.mrf.mxu0
    %v705 = vadd.f32 %v647, %v704
    %v706 = vand.u32 %v511, 4294901760
    %v707 = vsub.f32 %v511, %v706
    %708 = vmatmul.f32.gmra.mxu0 %v707
    %v709 = vpop.f32.mrf.mxu0
    %v710 = vadd.f32 %v651, %v709
    %v711 = vand.u32 %v514, 4294901760
    %v712 = vsub.f32 %v514, %v711
    %713 = vmatmul.f32.gmra.mxu0 %v712
    %v714 = vpop.f32.mrf.mxu0
    %v715 = vadd.f32 %v655, %v714
    %v716 = vand.u32 %v517, 4294901760
    %v717 = vsub.f32 %v517, %v716
    %718 = vmatmul.f32.gmra.mxu0 %v717
    %v719 = vpop.f32.mrf.mxu0
    %v720 = vadd.f32 %v659, %v719
    %721 = vdwg.mxu0
    %722 = vmatpush.msra.mxu0 0.0
    %723 = vmatpush.msra.mxu0 0.0
    %724 = vmatpush.msra.mxu0 0.0
    %725 = vmatpush.msra.mxu0 0.0
    %726 = vmatpush.msra.mxu0 0.0
    %727 = vmatpush.msra.mxu0 0.0
    %728 = vmatpush.msra.mxu0 0.0
    %729 = vmatpush.msra.mxu0 0.0
    %730 = vmatpush.msra.mxu0 0.0
    %731 = vmatpush.msra.mxu0 0.0
    %732 = vmatpush.msra.mxu0 0.0
    %733 = vmatpush.msra.mxu0 0.0
    %734 = vmatpush.msra.mxu0 0.0
    %735 = vmatpush.msra.mxu0 0.0
    %v736 = vand.u32 %v51, 4294901760
    %737 = vmatpush.msra.mxu0 %v736
    %v738 = vand.u32 %v50, 4294901760
    %739 = vmatpush.msra.mxu0 %v738
    %v740 = vand.u32 %v496, 4294901760
    %v741 = vsub.f32 %v496, %v740
    %v742 = vand.u32 %v741, 4294901760
    %743 = vmatmul.f32.gmra.mxu0 %v742
    %v744 = vpop.f32.mrf.mxu0
    %v745 = vadd.f32 %v685, %v744
    %v746 = vand.u32 %v499, 4294901760
    %v747 = vsub.f32 %v499, %v746
    %v748 = vand.u32 %v747, 4294901760
    %749 = vmatmul.f32.gmra.mxu0 %v748
    %v750 = vpop.f32.mrf.mxu0
    %v751 = vadd.f32 %v690, %v750
    %v752 = vand.u32 %v502, 4294901760
    %v753 = vsub.f32 %v502, %v752
    %v754 = vand.u32 %v753, 4294901760
    %755 = vmatmul.f32.gmra.mxu0 %v754
    %v756 = vpop.f32.mrf.mxu0
    %v757 = vadd.f32 %v695, %v756
    %v758 = vand.u32 %v505, 4294901760
    %v759 = vsub.f32 %v505, %v758
    %v760 = vand.u32 %v759, 4294901760
    %761 = vmatmul.f32.gmra.mxu0 %v760
    %v762 = vpop.f32.mrf.mxu0
    %v763 = vadd.f32 %v700, %v762
    %v764 = vand.u32 %v508, 4294901760
    %v765 = vsub.f32 %v508, %v764
    %v766 = vand.u32 %v765, 4294901760
    %767 = vmatmul.f32.gmra.mxu0 %v766
    %v768 = vpop.f32.mrf.mxu0
    %v769 = vadd.f32 %v705, %v768
    %v770 = vand.u32 %v511, 4294901760
    %v771 = vsub.f32 %v511, %v770
    %v772 = vand.u32 %v771, 4294901760
    %773 = vmatmul.f32.gmra.mxu0 %v772
    %v774 = vpop.f32.mrf.mxu0
    %v775 = vadd.f32 %v710, %v774
    %v776 = vand.u32 %v514, 4294901760
    %v777 = vsub.f32 %v514, %v776
    %v778 = vand.u32 %v777, 4294901760
    %779 = vmatmul.f32.gmra.mxu0 %v778
    %v780 = vpop.f32.mrf.mxu0
    %v781 = vadd.f32 %v715, %v780
    %v782 = vand.u32 %v517, 4294901760
    %v783 = vsub.f32 %v517, %v782
    %v784 = vand.u32 %v783, 4294901760
    %785 = vmatmul.f32.gmra.mxu0 %v784
    %v786 = vpop.f32.mrf.mxu0
    %v787 = vadd.f32 %v720, %v786
    %788 = vdwg.mxu0
    %789 = vmatpush.msra.mxu0 0.0
    %790 = vmatpush.msra.mxu0 0.0
    %791 = vmatpush.msra.mxu0 0.0
    %792 = vmatpush.msra.mxu0 0.0
    %793 = vmatpush.msra.mxu0 0.0
    %794 = vmatpush.msra.mxu0 0.0
    %795 = vmatpush.msra.mxu0 0.0
    %796 = vmatpush.msra.mxu0 0.0
    %797 = vmatpush.msra.mxu0 0.0
    %798 = vmatpush.msra.mxu0 0.0
    %799 = vmatpush.msra.mxu0 0.0
    %800 = vmatpush.msra.mxu0 0.0
    %801 = vmatpush.msra.mxu0 0.0
    %802 = vmatpush.msra.mxu0 0.0
    %v803 = vand.u32 %v51, 4294901760
    %v804 = vsub.f32 %v51, %v803
    %v805 = vand.u32 %v804, 4294901760
    %806 = vmatpush.msra.mxu0 %v805
    %v807 = vand.u32 %v50, 4294901760
    %v808 = vsub.f32 %v50, %v807
    %v809 = vand.u32 %v808, 4294901760
    %810 = vmatpush.msra.mxu0 %v809
    %v811 = vand.u32 %v496, 4294901760
    %812 = vmatmul.f32.gmra.mxu0 %v811
    %v813 = vpop.f32.mrf.mxu0
    %v814 = vadd.f32 %v745, %v813
    %v815 = vand.u32 %v499, 4294901760
    %816 = vmatmul.f32.gmra.mxu0 %v815
    %v817 = vpop.f32.mrf.mxu0
    %v818 = vadd.f32 %v751, %v817
    %v819 = vand.u32 %v502, 4294901760
    %820 = vmatmul.f32.gmra.mxu0 %v819
    %v821 = vpop.f32.mrf.mxu0
    %v822 = vadd.f32 %v757, %v821
    %v823 = vand.u32 %v505, 4294901760
    %824 = vmatmul.f32.gmra.mxu0 %v823
    %v825 = vpop.f32.mrf.mxu0
    %v826 = vadd.f32 %v763, %v825
    %v827 = vand.u32 %v508, 4294901760
    %828 = vmatmul.f32.gmra.mxu0 %v827
    %v829 = vpop.f32.mrf.mxu0
    %v830 = vadd.f32 %v769, %v829
    %v831 = vand.u32 %v511, 4294901760
    %832 = vmatmul.f32.gmra.mxu0 %v831
    %v833 = vpop.f32.mrf.mxu0
    %v834 = vadd.f32 %v775, %v833
    %v835 = vand.u32 %v514, 4294901760
    %836 = vmatmul.f32.gmra.mxu0 %v835
    %v837 = vpop.f32.mrf.mxu0
    %v838 = vadd.f32 %v781, %v837
    %v839 = vand.u32 %v517, 4294901760
    %840 = vmatmul.f32.gmra.mxu0 %v839
    %v841 = vpop.f32.mrf.mxu0
    %v842 = vadd.f32 %v787, %v841
    %843 = vdwg.mxu0
    %844 = vmatpush.msra.mxu0 0.0
    %845 = vmatpush.msra.mxu0 0.0
    %846 = vmatpush.msra.mxu0 0.0
    %847 = vmatpush.msra.mxu0 0.0
    %848 = vmatpush.msra.mxu0 0.0
    %849 = vmatpush.msra.mxu0 0.0
    %850 = vmatpush.msra.mxu0 0.0
    %851 = vmatpush.msra.mxu0 0.0
    %852 = vmatpush.msra.mxu0 0.0
    %853 = vmatpush.msra.mxu0 0.0
    %854 = vmatpush.msra.mxu0 0.0
    %855 = vmatpush.msra.mxu0 0.0
    %856 = vmatpush.msra.mxu0 0.0
    %857 = vmatpush.msra.mxu0 0.0
    %v858 = vand.u32 %v51, 4294901760
    %859 = vmatpush.msra.mxu0 %v858
    %v860 = vand.u32 %v50, 4294901760
    %861 = vmatpush.msra.mxu0 %v860
    %v862 = vand.u32 %v496, 4294901760
    %863 = vmatmul.f32.gmra.mxu0 %v862
    %v864 = vpop.f32.mrf.mxu0
    %v865 = vadd.f32 %v814, %v864
    %v866 = vand.u32 %v499, 4294901760
    %867 = vmatmul.f32.gmra.mxu0 %v866
    %v868 = vpop.f32.mrf.mxu0
    %v869 = vadd.f32 %v818, %v868
    %v870 = vand.u32 %v502, 4294901760
    %871 = vmatmul.f32.gmra.mxu0 %v870
    %v872 = vpop.f32.mrf.mxu0
    %v873 = vadd.f32 %v822, %v872
    %v874 = vand.u32 %v505, 4294901760
    %875 = vmatmul.f32.gmra.mxu0 %v874
    %v876 = vpop.f32.mrf.mxu0
    %v877 = vadd.f32 %v826, %v876
    %v878 = vand.u32 %v508, 4294901760
    %879 = vmatmul.f32.gmra.mxu0 %v878
    %v880 = vpop.f32.mrf.mxu0
    %v881 = vadd.f32 %v830, %v880
    %v882 = vand.u32 %v511, 4294901760
    %883 = vmatmul.f32.gmra.mxu0 %v882
    %v884 = vpop.f32.mrf.mxu0
    %v885 = vadd.f32 %v834, %v884
    %v886 = vand.u32 %v514, 4294901760
    %887 = vmatmul.f32.gmra.mxu0 %v886
    %v888 = vpop.f32.mrf.mxu0
    %v889 = vadd.f32 %v838, %v888
    %v890 = vand.u32 %v517, 4294901760
    %891 = vmatmul.f32.gmra.mxu0 %v890
    %v892 = vpop.f32.mrf.mxu0
    %v893 = vadd.f32 %v842, %v892
    %894 = vdwg.mxu0
    %v895 = vsel %vm56, %v865, -inf
    %v896 = vrot.slane %v895, 4
    %v897 = vmax.f32 %v895, %v896
    %v898 = vrot.slane %v897, 2
    %v899 = vmax.f32 %v897, %v898
    %v900 = vrot.slane %v899, 1
    %v901 = vmax.f32 %v899, %v900
    %v902 = vsel %vm56, %v869, -inf
    %v903 = vrot.slane %v902, 4
    %v904 = vmax.f32 %v902, %v903
    %v905 = vrot.slane %v904, 2
    %v906 = vmax.f32 %v904, %v905
    %v907 = vrot.slane %v906, 1
    %v908 = vmax.f32 %v906, %v907
    %v909 = vsel %vm56, %v873, -inf
    %v910 = vrot.slane %v909, 4
    %v911 = vmax.f32 %v909, %v910
    %v912 = vrot.slane %v911, 2
    %v913 = vmax.f32 %v911, %v912
    %v914 = vrot.slane %v913, 1
    %v915 = vmax.f32 %v913, %v914
    %v916 = vsel %vm56, %v877, -inf
    %v917 = vrot.slane %v916, 4
    %v918 = vmax.f32 %v916, %v917
    %v919 = vrot.slane %v918, 2
    %v920 = vmax.f32 %v918, %v919
    %v921 = vrot.slane %v920, 1
    %v922 = vmax.f32 %v920, %v921
    %v923 = vsel %vm56, %v881, -inf
    %v924 = vrot.slane %v923, 4
    %v925 = vmax.f32 %v923, %v924
    %v926 = vrot.slane %v925, 2
    %v927 = vmax.f32 %v925, %v926
    %v928 = vrot.slane %v927, 1
    %v929 = vmax.f32 %v927, %v928
    %v930 = vsel %vm56, %v885, -inf
    %v931 = vrot.slane %v930, 4
    %v932 = vmax.f32 %v930, %v931
    %v933 = vrot.slane %v932, 2
    %v934 = vmax.f32 %v932, %v933
    %v935 = vrot.slane %v934, 1
    %v936 = vmax.f32 %v934, %v935
    %v937 = vsel %vm56, %v889, -inf
    %v938 = vrot.slane %v937, 4
    %v939 = vmax.f32 %v937, %v938
    %v940 = vrot.slane %v939, 2
    %v941 = vmax.f32 %v939, %v940
    %v942 = vrot.slane %v941, 1
    %v943 = vmax.f32 %v941, %v942
    %v944 = vsel %vm56, %v893, -inf
    %v945 = vrot.slane %v944, 4
    %v946 = vmax.f32 %v944, %v945
    %v947 = vrot.slane %v946, 2
    %v948 = vmax.f32 %v946, %v947
    %v949 = vrot.slane %v948, 1
    %v950 = vmax.f32 %v948, %v949
    %v951 = vsub.f32 %v865, %v901
    %v952 = vsub.f32 %v869, %v908
    %v953 = vsub.f32 %v873, %v915
    %v954 = vsub.f32 %v877, %v922
    %v955 = vsub.f32 %v881, %v929
    %v956 = vsub.f32 %v885, %v936
    %v957 = vsub.f32 %v889, %v943
    %v958 = vsub.f32 %v893, %v950
    %v959 = vmul.f32 %v951, 1.442695
    %v960 = vpow.pop %v959
    %v961 = vmul.f32 %v952, 1.442695
    %v962 = vpow.pop %v961
    %v963 = vmul.f32 %v953, 1.442695
    %v964 = vpow.pop %v963
    %v965 = vmul.f32 %v954, 1.442695
    %v966 = vpow.pop %v965
    %v967 = vmul.f32 %v955, 1.442695
    %v968 = vpow.pop %v967
    %v969 = vmul.f32 %v956, 1.442695
    %v970 = vpow.pop %v969
    %v971 = vmul.f32 %v957, 1.442695
    %v972 = vpow.pop %v971
    %v973 = vmul.f32 %v958, 1.442695
    %v974 = vpow.pop %v973
    %v975 = vsel %vm56, %v960, 0.0
    %v976 = vrot.slane %v975, 4
    %v977 = vadd.f32 %v975, %v976
    %v978 = vrot.slane %v977, 2
    %v979 = vadd.f32 %v977, %v978
    %v980 = vrot.slane %v979, 1
    %v981 = vadd.f32 %v979, %v980
    %v982 = vsel %vm56, %v962, 0.0
    %v983 = vrot.slane %v982, 4
    %v984 = vadd.f32 %v982, %v983
    %v985 = vrot.slane %v984, 2
    %v986 = vadd.f32 %v984, %v985
    %v987 = vrot.slane %v986, 1
    %v988 = vadd.f32 %v986, %v987
    %v989 = vsel %vm56, %v964, 0.0
    %v990 = vrot.slane %v989, 4
    %v991 = vadd.f32 %v989, %v990
    %v992 = vrot.slane %v991, 2
    %v993 = vadd.f32 %v991, %v992
    %v994 = vrot.slane %v993, 1
    %v995 = vadd.f32 %v993, %v994
    %v996 = vsel %vm56, %v966, 0.0
    %v997 = vrot.slane %v996, 4
    %v998 = vadd.f32 %v996, %v997
    %v999 = vrot.slane %v998, 2
    %v1000 = vadd.f32 %v998, %v999
    %v1001 = vrot.slane %v1000, 1
    %v1002 = vadd.f32 %v1000, %v1001
    %v1003 = vsel %vm56, %v968, 0.0
    %v1004 = vrot.slane %v1003, 4
    %v1005 = vadd.f32 %v1003, %v1004
    %v1006 = vrot.slane %v1005, 2
    %v1007 = vadd.f32 %v1005, %v1006
    %v1008 = vrot.slane %v1007, 1
    %v1009 = vadd.f32 %v1007, %v1008
    %v1010 = vsel %vm56, %v970, 0.0
    %v1011 = vrot.slane %v1010, 4
    %v1012 = vadd.f32 %v1010, %v1011
    %v1013 = vrot.slane %v1012, 2
    %v1014 = vadd.f32 %v1012, %v1013
    %v1015 = vrot.slane %v1014, 1
    %v1016 = vadd.f32 %v1014, %v1015
    %v1017 = vsel %vm56, %v972, 0.0
    %v1018 = vrot.slane %v1017, 4
    %v1019 = vadd.f32 %v1017, %v1018
    %v1020 = vrot.slane %v1019, 2
    %v1021 = vadd.f32 %v1019, %v1020
    %v1022 = vrot.slane %v1021, 1
    %v1023 = vadd.f32 %v1021, %v1022
    %v1024 = vsel %vm56, %v974, 0.0
    %v1025 = vrot.slane %v1024, 4
    %v1026 = vadd.f32 %v1024, %v1025
    %v1027 = vrot.slane %v1026, 2
    %v1028 = vadd.f32 %v1026, %v1027
    %v1029 = vrot.slane %v1028, 1
    %v1030 = vadd.f32 %v1028, %v1029
    %v1031 = vrcp.pop %v981
    %v1032 = vmul.f32 %v981, %v1031
    %v1033 = vsub.f32 1.0, %v1032
    %v1034 = vmul.f32 %v1031, %v1033
    %v1035 = vadd.f32 %v1031, %v1034
    %vm1036 = vweird.f32 %v981
    %vm1037 = vweird.f32 %v1031
    %vm1038 = vmor %vm1036, %vm1037
    %v1039 = vsel %vm1038, %v1031, %v1035
    %v1040 = vand.u32 2147483647, %v981
    %vm1041 = vcmp.eq.f32.partialorder %v1040, 8.507059e+37
    %v1042 = vand.u32 %v981, 2147483648
    %v1043 = vor.u32 1.1754944e-38, %v1042
    %v1044 = vsel %vm1041, %v1043, %v1039
    %v1045 = vmul.f32 1.0, %v1044
    %v1046 = vrcp.pop %v988
    %v1047 = vmul.f32 %v988, %v1046
    %v1048 = vsub.f32 1.0, %v1047
    %v1049 = vmul.f32 %v1046, %v1048
    %v1050 = vadd.f32 %v1046, %v1049
    %vm1051 = vweird.f32 %v988
    %vm1052 = vweird.f32 %v1046
    %vm1053 = vmor %vm1051, %vm1052
    %v1054 = vsel %vm1053, %v1046, %v1050
    %v1055 = vand.u32 2147483647, %v988
    %vm1056 = vcmp.eq.f32.partialorder %v1055, 8.507059e+37
    %v1057 = vand.u32 %v988, 2147483648
    %v1058 = vor.u32 1.1754944e-38, %v1057
    %v1059 = vsel %vm1056, %v1058, %v1054
    %v1060 = vmul.f32 1.0, %v1059
    %v1061 = vrcp.pop %v995
    %v1062 = vmul.f32 %v995, %v1061
    %v1063 = vsub.f32 1.0, %v1062
    %v1064 = vmul.f32 %v1061, %v1063
    %v1065 = vadd.f32 %v1061, %v1064
    %vm1066 = vweird.f32 %v995
    %vm1067 = vweird.f32 %v1061
    %vm1068 = vmor %vm1066, %vm1067
    %v1069 = vsel %vm1068, %v1061, %v1065
    %v1070 = vand.u32 2147483647, %v995
    %vm1071 = vcmp.eq.f32.partialorder %v1070, 8.507059e+37
    %v1072 = vand.u32 %v995, 2147483648
    %v1073 = vor.u32 1.1754944e-38, %v1072
    %v1074 = vsel %vm1071, %v1073, %v1069
    %v1075 = vmul.f32 1.0, %v1074
    %v1076 = vrcp.pop %v1002
    %v1077 = vmul.f32 %v1002, %v1076
    %v1078 = vsub.f32 1.0, %v1077
    %v1079 = vmul.f32 %v1076, %v1078
    %v1080 = vadd.f32 %v1076, %v1079
    %vm1081 = vweird.f32 %v1002
    %vm1082 = vweird.f32 %v1076
    %vm1083 = vmor %vm1081, %vm1082
    %v1084 = vsel %vm1083, %v1076, %v1080
    %v1085 = vand.u32 2147483647, %v1002
    %vm1086 = vcmp.eq.f32.partialorder %v1085, 8.507059e+37
    %v1087 = vand.u32 %v1002, 2147483648
    %v1088 = vor.u32 1.1754944e-38, %v1087
    %v1089 = vsel %vm1086, %v1088, %v1084
    %v1090 = vmul.f32 1.0, %v1089
    %v1091 = vrcp.pop %v1009
    %v1092 = vmul.f32 %v1009, %v1091
    %v1093 = vsub.f32 1.0, %v1092
    %v1094 = vmul.f32 %v1091, %v1093
    %v1095 = vadd.f32 %v1091, %v1094
    %vm1096 = vweird.f32 %v1009
    %vm1097 = vweird.f32 %v1091
    %vm1098 = vmor %vm1096, %vm1097
    %v1099 = vsel %vm1098, %v1091, %v1095
    %v1100 = vand.u32 2147483647, %v1009
    %vm1101 = vcmp.eq.f32.partialorder %v1100, 8.507059e+37
    %v1102 = vand.u32 %v1009, 2147483648
    %v1103 = vor.u32 1.1754944e-38, %v1102
    %v1104 = vsel %vm1101, %v1103, %v1099
    %v1105 = vmul.f32 1.0, %v1104
    %v1106 = vrcp.pop %v1016
    %v1107 = vmul.f32 %v1016, %v1106
    %v1108 = vsub.f32 1.0, %v1107
    %v1109 = vmul.f32 %v1106, %v1108
    %v1110 = vadd.f32 %v1106, %v1109
    %vm1111 = vweird.f32 %v1016
    %vm1112 = vweird.f32 %v1106
    %vm1113 = vmor %vm1111, %vm1112
    %v1114 = vsel %vm1113, %v1106, %v1110
    %v1115 = vand.u32 2147483647, %v1016
    %vm1116 = vcmp.eq.f32.partialorder %v1115, 8.507059e+37
    %v1117 = vand.u32 %v1016, 2147483648
    %v1118 = vor.u32 1.1754944e-38, %v1117
    %v1119 = vsel %vm1116, %v1118, %v1114
    %v1120 = vmul.f32 1.0, %v1119
    %v1121 = vrcp.pop %v1023
    %v1122 = vmul.f32 %v1023, %v1121
    %v1123 = vsub.f32 1.0, %v1122
    %v1124 = vmul.f32 %v1121, %v1123
    %v1125 = vadd.f32 %v1121, %v1124
    %vm1126 = vweird.f32 %v1023
    %vm1127 = vweird.f32 %v1121
    %vm1128 = vmor %vm1126, %vm1127
    %v1129 = vsel %vm1128, %v1121, %v1125
    %v1130 = vand.u32 2147483647, %v1023
    %vm1131 = vcmp.eq.f32.partialorder %v1130, 8.507059e+37
    %v1132 = vand.u32 %v1023, 2147483648
    %v1133 = vor.u32 1.1754944e-38, %v1132
    %v1134 = vsel %vm1131, %v1133, %v1129
    %v1135 = vmul.f32 1.0, %v1134
    %v1136 = vrcp.pop %v1030
    %v1137 = vmul.f32 %v1030, %v1136
    %v1138 = vsub.f32 1.0, %v1137
    %v1139 = vmul.f32 %v1136, %v1138
    %v1140 = vadd.f32 %v1136, %v1139
    %vm1141 = vweird.f32 %v1030
    %vm1142 = vweird.f32 %v1136
    %vm1143 = vmor %vm1141, %vm1142
    %v1144 = vsel %vm1143, %v1136, %v1140
    %v1145 = vand.u32 2147483647, %v1030
    %vm1146 = vcmp.eq.f32.partialorder %v1145, 8.507059e+37
    %v1147 = vand.u32 %v1030, 2147483648
    %v1148 = vor.u32 1.1754944e-38, %v1147
    %v1149 = vsel %vm1146, %v1148, %v1144
    %v1150 = vmul.f32 1.0, %v1149
    %v1151 = vmul.f32 %v960, %v1045
    %v1152 = vmul.f32 %v962, %v1060
    %v1153 = vmul.f32 %v964, %v1075
    %v1154 = vmul.f32 %v966, %v1090
    %v1155 = vmul.f32 %v968, %v1105
    %v1156 = vmul.f32 %v970, %v1120
    %v1157 = vmul.f32 %v972, %v1135
    %v1158 = vmul.f32 %v974, %v1150
    %v1159 = vmul.f32 %v1151, %v37
    %v1160 = vmul.f32 %v1152, %v38
    %v1161 = vmul.f32 %v1153, %v39
    %v1162 = vmul.f32 %v1154, %v40
    %v1163 = vmul.f32 %v1155, %v41
    %v1164 = vmul.f32 %v1156, %v42
    %v1165 = vmul.f32 %v1157, %v43
    %v1166 = vmul.f32 %v1158, %v44
    %v1167 = vadd.f32 %v1159, %v1163
    %v1168 = vadd.f32 %v1160, %v1164
    %v1169 = vadd.f32 %v1161, %v1165
    %v1170 = vadd.f32 %v1162, %v1166
    %v1171 = vrot.slane %v1169, 4
    %vm1172 = vcmask 1047556
    %v1173 = vsel %vm1172, %v1171, %v1167
    %v1174 = vrot.slane %v1167, 4
    %v1175 = vsel %vm1172, %v1169, %v1174
    %v1177 = vunpack.c.l.s4 1983009808
    %v1178 = vunpack.c.0.s8 %v1177
    %v1179 = vperm.slane %v1173, %v1178
    %v1181 = vunpack.c.l.s4 1983009808
    %v1182 = vunpack.c.0.s8 %v1181
    %v1183 = vperm.slane %v1175, %v1182
    %v1184 = vrot.slane %v1170, 4
    %v1185 = vsel %vm1172, %v1184, %v1168
    %v1186 = vrot.slane %v1168, 4
    %v1187 = vsel %vm1172, %v1170, %v1186
    %v1189 = vunpack.c.l.s4 1983009808
    %v1190 = vunpack.c.0.s8 %v1189
    %v1191 = vperm.slane %v1185, %v1190
    %v1193 = vunpack.c.l.s4 1983009808
    %v1194 = vunpack.c.0.s8 %v1193
    %v1195 = vperm.slane %v1187, %v1194
    %v1196 = vrot.slane %v1191, 4
    %v1197 = vsel %vm1172, %v1196, %v1179
    %v1198 = vrot.slane %v1179, 4
    %v1199 = vsel %vm1172, %v1191, %v1198
    %v1201 = vunpack.c.l.s4 1934713408
    %v1202 = vunpack.c.0.s8 %v1201
    %v1203 = vperm.slane %v1197, %v1202
    %v1205 = vunpack.c.l.s4 1934713408
    %v1206 = vunpack.c.0.s8 %v1205
    %v1207 = vperm.slane %v1199, %v1206
    %v1208 = vrot.slane %v1195, 4
    %v1209 = vsel %vm1172, %v1208, %v1183
    %v1210 = vrot.slane %v1183, 4
    %v1211 = vsel %vm1172, %v1195, %v1210
    %v1213 = vunpack.c.l.s4 1934713408
    %v1214 = vunpack.c.0.s8 %v1213
    %v1215 = vperm.slane %v1209, %v1214
    %v1217 = vunpack.c.l.s4 1934713408
    %v1218 = vunpack.c.0.s8 %v1217
    %v1219 = vperm.slane %v1211, %v1218
    %v1220 = vrot.slane %v1203, 4
    %v1221 = vsel %vm1172, 0.0, %v1220
    %v1222 = vrot.slane %v1207, 4
    %v1223 = vsel %vm1172, 0.0, %v1222
    %v1224 = vrot.slane %v1215, 4
    %v1225 = vsel %vm1172, 0.0, %v1224
    %v1226 = vrot.slane %v1219, 4
    %v1227 = vsel %vm1172, 0.0, %v1226
    %1229 = vrot.lane.b32.xlu0 %v1221, 32
    %v1230 = vpop.permute.xlu0 %1229
    %1233 = vrot.lane.b32.xlu0 %v1207, 64
    %v1234 = vpop.permute.xlu0 %1233
    %1237 = vrot.lane.b32.xlu0 %v1223, 96
    %v1238 = vpop.permute.xlu0 %1237
    %1241 = vrot.lane.b32.xlu0 %v1225, 32
    %v1242 = vpop.permute.xlu0 %1241
    %1245 = vrot.lane.b32.xlu0 %v1219, 64
    %v1246 = vpop.permute.xlu0 %1245
    %1249 = vrot.lane.b32.xlu0 %v1227, 96
    %v1250 = vpop.permute.xlu0 %1249
    %v1252 = vsel %vm56, %v1203, %v1230
    %vm1253 = vcmask 523264
    %v1254 = vsel %vm1253, %v1252, %v1234
    %vm1255 = vcmask 785408
    %v1256 = vsel %vm1255, %v1254, %v1238
    %v1257 = vsel %vm56, %v1215, %v1242
    %v1258 = vsel %vm1253, %v1257, %v1246
    %v1259 = vsel %vm1255, %v1258, %v1250
    %v1262 = vrot.slane %v1259, 4
    %vm1263 = vcmask 1043456
    %v1264 = vsel %vm1263, %v1256, %v1262
    %1266 = vst [vmem:[#allocation5] sm:$0xff] %v1264
    // Predicated region
    $region26: #{tpu_custom_call.1} parent=1 // pred_check
      _
    $region27: #{tpu_custom_call.1} parent=1 // pred_check_branch
      %1268 = sbr.rel (0) target = $region29
    $region28: #{tpu_custom_call.1} parent=1 // pred_region
      %1270 = vsyncadd [#allocation4], 0
      %s1272 = sshll.u32 [#allocation5], 4
      %s1273 = int_to_ptr.vmem [resolvable:$true] %s1272
      %s1274 = sshll.u32 %s5, 4
      %s1275 = int_to_ptr.hbm [resolvable:$true] %s1274
      %1277 = dma.vmem_to_hbm [thread:$0]  %s1273, 128, %s1275, [#allocation4]
    $region29: #{tpu_custom_call.1} parent=1 // pred_fallthru
      _
    // Predicated region
    $region30: #{tpu_custom_call.1} parent=1 // pred_check
      _
    $region31: #{tpu_custom_call.1} parent=1 // pred_check_branch
      %1279 = sbr.rel (0) target = $region33
    $region32: #{tpu_custom_call.1} parent=1 // pred_region
      %1281 = dma.done [#allocation4], 128
    $region33: #{tpu_custom_call.1} parent=1 // pred_fallthru
      _
    %1282 = vsyncpa [#allocation3], 1
    %1283 = vsyncpa [#allocation4], 1

</llo_original>
